<compile_context>
chip_gen: v5e
topology: v5e:2x2
jax: 0.10.0
libtpu: 0.0.40
codegen_flags: <defaults>
</compile_context>

<pallas_src>
import functools
import math

import jax
import jax.numpy as jnp
from jax.experimental import pallas as pl
from jax.experimental.pallas import tpu as pltpu


def _round_up(v: int, m: int) -> int:
    return ((v + m - 1) // m) * m


def _sage_layer1_kernel(a_ref, xk_ref, xi_ref, w_ref, b_ref, *rest, training: bool):
    if training:
        drop_ref, o_ref, acc_ref = rest
    else:
        o_ref, acc_ref = rest

    k = pl.program_id(1)

    @pl.when(k == 0)
    def _init():
        acc_ref[...] = jnp.zeros_like(acc_ref)

    # mean-aggregation of neighbor features, tiled along the source-node axis
    acc_ref[...] += jnp.dot(a_ref[...], xk_ref[...],
                            preferred_element_type=jnp.float32)

    @pl.when(k == pl.num_programs(1) - 1)
    def _finalize():
        # fused linear: [agg, x_root] @ [W_l ; W_r]  (single MXU call)
        hin = jnp.concatenate(
            [acc_ref[...], xi_ref[...].astype(jnp.float32)], axis=-1)
        h = jnp.dot(hin, w_ref[...], preferred_element_type=jnp.float32)
        h = h + b_ref[...]
        h = jnp.maximum(h, 0.0)                    # ReLU
        if training:
            h = h * drop_ref[...]                  # dropout (precomputed 0 / 1/(1-p))
        o_ref[...] = h.astype(o_ref.dtype)


def sage_layer1_forward(x, edge_index, params, *, training=False, rng_key=None,
                        p=0.5, agg_dtype=jnp.bfloat16, tile_m=256, tile_k=512):
    """x: [N, F_in] float32, edge_index: [2, E] int32 (row 0 = src, row 1 = dst)."""
    n, f_in = x.shape
    wl, bl, wr = params["lin_l_w"], params["lin_l_b"], params["lin_r_w"]
    hidden = wl.shape[1]

    # --- glue: densify edge_index into a row-normalized adjacency (mean aggr) ---
    src, dst = edge_index[0], edge_index[1]
    adj = jnp.zeros((n, n), jnp.float32).at[dst, src].add(1.0)
    deg = adj.sum(axis=1, keepdims=True)
    adj = adj * jnp.where(deg > 0, 1.0 / deg, 0.0)

    # --- lane/sublane-friendly padding + tile sizing ---
    f_p = _round_up(f_in, 128)
    h_p = _round_up(hidden, 128)
    n_aligned = _round_up(n, 128)
    tm = min(tile_m, n_aligned)
    tk = min(tile_k, n_aligned)
    n_p = _round_up(n, math.lcm(tm, tk))

    adj_p = jnp.zeros((n_p, n_p), agg_dtype).at[:n, :n].set(adj.astype(agg_dtype))
    x_p = jnp.zeros((n_p, f_p), agg_dtype).at[:n, :f_in].set(x.astype(agg_dtype))

    # fused weight matrix: rows [0:f_p) = W_l (neighbor), rows [f_p:2f_p) = W_r (root)
    w_cat = jnp.zeros((2 * f_p, h_p), jnp.float32)
    w_cat = w_cat.at[:f_in, :hidden].set(wl.astype(jnp.float32))
    w_cat = w_cat.at[f_p:f_p + f_in, :hidden].set(wr.astype(jnp.float32))
    b_p = jnp.zeros((1, h_p), jnp.float32).at[0, :hidden].set(bl.astype(jnp.float32))

    inputs = [adj_p, x_p, x_p, w_cat, b_p]
    in_specs = [
        pl.BlockSpec((tm, tk), lambda i, k: (i, k)),        # A tile
        pl.BlockSpec((tk, f_p), lambda i, k: (k, 0)),       # X (reduction rows)
        pl.BlockSpec((tm, f_p), lambda i, k: (i, 0)),       # X (root rows)
        pl.BlockSpec((2 * f_p, h_p), lambda i, k: (0, 0)),  # fused weights (resident)
        pl.BlockSpec((1, h_p), lambda i, k: (0, 0)),        # bias (resident)
    ]
    if training:
        if rng_key is None:
            rng_key = jax.random.PRNGKey(0)
        keep = jax.random.bernoulli(rng_key, 1.0 - p, (n_p, h_p))
        drop_mask = keep.astype(jnp.float32) * (1.0 / (1.0 - p))
        inputs.append(drop_mask)
        in_specs.append(pl.BlockSpec((tm, h_p), lambda i, k: (i, 0)))

    kernel = functools.partial(_sage_layer1_kernel, training=training)

    out_p = pl.pallas_call(
        kernel,
        grid=(n_p // tm, n_p // tk),
        in_specs=in_specs,
        out_specs=pl.BlockSpec((tm, h_p), lambda i, k: (i, 0)),
        out_shape=jax.ShapeDtypeStruct((n_p, h_p), x.dtype),
        scratch_shapes=[pltpu.VMEM((tm, f_p), jnp.float32)],
        compiler_params=pltpu.CompilerParams(
            dimension_semantics=("parallel", "arbitrary")),
    )(*inputs)
    return out_p[:n, :hidden]


def _reference_eval(x, edge_index, params):
    """Pure-JAX reference (eval mode, no dropout) for correctness check."""
    n = x.shape[0]
    src, dst = edge_index[0], edge_index[1]
    adj = jnp.zeros((n, n), jnp.float32).at[dst, src].add(1.0)
    deg = adj.sum(axis=1, keepdims=True)
    adj = adj * jnp.where(deg > 0, 1.0 / deg, 0.0)
    hp = jax.lax.Precision.HIGHEST
    agg = jnp.dot(adj, x, precision=hp)
    h = (jnp.dot(agg, params["lin_l_w"], precision=hp)
         + params["lin_l_b"][None, :]
         + jnp.dot(x, params["lin_r_w"], precision=hp))
    return jnp.maximum(h, 0.0)


if __name__ == "__main__":
    key = jax.random.PRNGKey(0)
    N, F_IN, HIDDEN = 8, 4, 32

    k_x, k_wl, k_bl, k_wr, k_drop = jax.random.split(key, 5)
    x = jax.random.normal(k_x, (N, F_IN), dtype=jnp.float32)
    params = {
        "lin_l_w": jax.random.normal(k_wl, (F_IN, HIDDEN), jnp.float32) * 0.1,
        "lin_l_b": jax.random.normal(k_bl, (HIDDEN,), jnp.float32) * 0.1,
        "lin_r_w": jax.random.normal(k_wr, (F_IN, HIDDEN), jnp.float32) * 0.1,
    }
    # small directed graph: ring + a few chords
    edge_index = jnp.array(
        [[0, 1, 2, 3, 4, 5, 6, 7, 0, 2, 4, 6],
         [1, 2, 3, 4, 5, 6, 7, 0, 4, 6, 0, 2]], dtype=jnp.int32)

    ref = _reference_eval(x, edge_index, params)

    # eval mode, f32 aggregation path: tight check against pure-JAX reference
    out_f32 = jax.block_until_ready(
        sage_layer1_forward(x, edge_index, params, training=False,
                            agg_dtype=jnp.float32))
    assert out_f32.shape == (N, HIDDEN)
    assert jnp.allclose(out_f32, ref, atol=5e-3, rtol=5e-3), "f32 path mismatch"

    # eval mode, default bf16 aggregation path (halves HBM traffic): loose check
    out_bf16 = jax.block_until_ready(
        sage_layer1_forward(x, edge_index, params, training=False))
    assert jnp.allclose(out_bf16, ref, atol=5e-2, rtol=5e-2), "bf16 path mismatch"

    # training mode: dropout mask applied inside the kernel's finalize step
    out_train = jax.block_until_ready(
        sage_layer1_forward(x, edge_index, params, training=True, rng_key=k_drop))
    assert out_train.shape == (N, HIDDEN)
    assert bool(jnp.all(jnp.isfinite(out_train)))

    print("KERNEL_OK")
</pallas_src>

<mosaic_0001>
module attributes {stable_mosaic.version = 11 : i64} {
  func.func @_sage_layer1_kernel(%arg0: i32, %arg1: i32, %arg2: memref<128x128xf32, #tpu.memory_space<vmem>>, %arg3: memref<128x128xf32, #tpu.memory_space<vmem>>, %arg4: memref<128x128xf32, #tpu.memory_space<vmem>>, %arg5: memref<256x128xf32, #tpu.memory_space<vmem>>, %arg6: memref<1x128xf32, #tpu.memory_space<vmem>>, %arg7: memref<128x128xf32, #tpu.memory_space<vmem>>, %arg8: memref<128x128xf32, #tpu.memory_space<vmem>>) attributes {dimension_semantics = [#tpu.dimension_semantics<parallel>, #tpu.dimension_semantics<arbitrary>], iteration_bounds = array<i64: 1, 1>, scalar_prefetch = 0 : i64, scratch_operands = 1 : i64, tpu.core_type = #tpu.core_type<tc>, window_params = [{transform_indices = @transform_0, window_bounds = array<i64: 128, 128>}, {transform_indices = @transform_1, window_bounds = array<i64: 128, 128>}, {transform_indices = @transform_2, window_bounds = array<i64: 128, 128>}, {pipeline_mode = #tpu.pipeline_mode<synchronous>, transform_indices = @transform_3, window_bounds = array<i64: 256, 128>}, {pipeline_mode = #tpu.pipeline_mode<synchronous>, transform_indices = @transform_4, window_bounds = array<i64: 1, 128>}, {transform_indices = @transform_5, window_bounds = array<i64: 128, 128>}]} {
    %c0_i32 = arith.constant 0 : i32
    %0 = arith.cmpi eq, %arg1, %c0_i32 : i32
    %1 = arith.extui %0 : i1 to i32
    %c0_i32_0 = arith.constant 0 : i32
    %2 = arith.cmpi ne, %1, %c0_i32_0 : i32
    scf.if %2 {
      %cst_10 = arith.constant 0.000000e+00 : f32
      %12 = vector.broadcast %cst_10 : f32 to vector<128x128xf32>
      %c0_11 = arith.constant 0 : index
      %c0_12 = arith.constant 0 : index
      %13 = vector.load %arg8[%c0_11, %c0_12] : memref<128x128xf32, #tpu.memory_space<vmem>>, vector<128x128xf32>
      tpu.vector_store %arg8[%c0_11, %c0_12], %12 {strides = array<i32>} : memref<128x128xf32, #tpu.memory_space<vmem>>, vector<128x128xf32>,
    } else {
    }
    %c0 = arith.constant 0 : index
    %c0_1 = arith.constant 0 : index
    %3 = vector.load %arg8[%c0, %c0_1] : memref<128x128xf32, #tpu.memory_space<vmem>>, vector<128x128xf32>
    %c0_2 = arith.constant 0 : index
    %c0_3 = arith.constant 0 : index
    %4 = vector.load %arg2[%c0_2, %c0_3] : memref<128x128xf32, #tpu.memory_space<vmem>>, vector<128x128xf32>
    %c0_4 = arith.constant 0 : index
    %c0_5 = arith.constant 0 : index
    %5 = vector.load %arg3[%c0_4, %c0_5] : memref<128x128xf32, #tpu.memory_space<vmem>>, vector<128x128xf32>
    %cst = arith.constant dense<0.000000e+00> : vector<128x128xf32>
    %6 = tpu.matmul %4, %5, %cst {dimension_numbers = #tpu.dot_dimension_numbers<[1], [0], [0], [1], [0, 0, 1, 1], [], []>} : vector<128x128xf32>, vector<128x128xf32>, vector<128x128xf32> -> vector<128x128xf32>
    %7 = arith.addf %3, %6 : vector<128x128xf32>
    %c0_6 = arith.constant 0 : index
    %c0_7 = arith.constant 0 : index
    %8 = vector.load %arg8[%c0_6, %c0_7] : memref<128x128xf32, #tpu.memory_space<vmem>>, vector<128x128xf32>
    tpu.vector_store %arg8[%c0_6, %c0_7], %7 {strides = array<i32>} : memref<128x128xf32, #tpu.memory_space<vmem>>, vector<128x128xf32>,
    %c0_i32_8 = arith.constant 0 : i32
    %9 = arith.cmpi eq, %arg1, %c0_i32_8 : i32
    %10 = arith.extui %9 : i1 to i32
    %c0_i32_9 = arith.constant 0 : i32
    %11 = arith.cmpi ne, %10, %c0_i32_9 : i32
    scf.if %11 {
      %c0_10 = arith.constant 0 : index
      %c0_11 = arith.constant 0 : index
      %12 = vector.load %arg8[%c0_10, %c0_11] : memref<128x128xf32, #tpu.memory_space<vmem>>, vector<128x128xf32>
      %c0_12 = arith.constant 0 : index
      %c0_13 = arith.constant 0 : index
      %13 = vector.load %arg4[%c0_12, %c0_13] : memref<128x128xf32, #tpu.memory_space<vmem>>, vector<128x128xf32>
      %14 = tpu.concatenate %12, %13 in 1 : vector<128x128xf32>, vector<128x128xf32> -> vector<128x256xf32>
      %c0_14 = arith.constant 0 : index
      %c0_15 = arith.constant 0 : index
      %15 = vector.load %arg5[%c0_14, %c0_15] : memref<256x128xf32, #tpu.memory_space<vmem>>, vector<256x128xf32>
      %cst_16 = arith.constant dense<0.000000e+00> : vector<128x128xf32>
      %16 = tpu.matmul %14, %15, %cst_16 {dimension_numbers = #tpu.dot_dimension_numbers<[1], [0], [0], [1], [0, 0, 1, 1], [], []>} : vector<128x256xf32>, vector<256x128xf32>, vector<128x128xf32> -> vector<128x128xf32>
      %c0_17 = arith.constant 0 : index
      %c0_18 = arith.constant 0 : index
      %17 = vector.load %arg6[%c0_17, %c0_18] : memref<1x128xf32, #tpu.memory_space<vmem>>, vector<1x128xf32>
      %18 = vector.broadcast %17 : vector<1x128xf32> to vector<128x128xf32>
      %19 = arith.addf %16, %18 : vector<128x128xf32>
      %cst_19 = arith.constant 0.000000e+00 : f32
      %20 = vector.broadcast %cst_19 : f32 to vector<128x128xf32>
      %21 = arith.maximumf %19, %20 : vector<128x128xf32>
      %c0_20 = arith.constant 0 : index
      %c0_21 = arith.constant 0 : index
      %22 = vector.load %arg7[%c0_20, %c0_21] : memref<128x128xf32, #tpu.memory_space<vmem>>, vector<128x128xf32>
      tpu.vector_store %arg7[%c0_20, %c0_21], %21 {strides = array<i32>} : memref<128x128xf32, #tpu.memory_space<vmem>>, vector<128x128xf32>,
    } else {
    }
    return
  }
  func.func @transform_0(%arg0: i32, %arg1: i32) -> (i32, i32) {
    %c0_i32 = arith.constant 0 : i32
    return %arg0, %arg1 : i32, i32
  }
  func.func @transform_1(%arg0: i32, %arg1: i32) -> (i32, i32) {
    %c0_i32 = arith.constant 0 : i32
    %c0_i32_0 = arith.constant 0 : i32
    return %arg1, %c0_i32 : i32, i32
  }
  func.func @transform_2(%arg0: i32, %arg1: i32) -> (i32, i32) {
    %c0_i32 = arith.constant 0 : i32
    %c0_i32_0 = arith.constant 0 : i32
    return %arg0, %c0_i32 : i32, i32
  }
  func.func @transform_3(%arg0: i32, %arg1: i32) -> (i32, i32) {
    %c0_i32 = arith.constant 0 : i32
    %c0_i32_0 = arith.constant 0 : i32
    %c0_i32_1 = arith.constant 0 : i32
    return %c0_i32, %c0_i32_0 : i32, i32
  }
  func.func @transform_4(%arg0: i32, %arg1: i32) -> (i32, i32) {
    %c0_i32 = arith.constant 0 : i32
    %c0_i32_0 = arith.constant 0 : i32
    %c0_i32_1 = arith.constant 0 : i32
    return %c0_i32, %c0_i32_0 : i32, i32
  }
  func.func @transform_5(%arg0: i32, %arg1: i32) -> (i32, i32) {
    %c0_i32 = arith.constant 0 : i32
    %c0_i32_0 = arith.constant 0 : i32
    return %arg0, %c0_i32 : i32, i32
  }
}

</mosaic_0001>

<llo_original>
// kernel: tpu_custom_call.1
$region0: #{tpu_custom_call.1}
  #allocation0 [shape = 'u32[]', space=smem, size = 0x4, offset = 0x4, fixed_abs, tag = 'smem constant byte address 0x4 - core index']
  #allocation1 [shape = 'u32[72,128]{1,0:T(1,128)}', space=vmem, size = 0x9000, scoped, tag = 'internal scratch']
  #allocation2 [shape = 'f32[128,128]{1,0:T(8,128)}', space=vmem, size = 0x10000, scoped, tag = 'scratch operand']
  %s0 = inlined_call_operand.hbm [shape: f32[128,128], index: 0, kind: input, shape index: {}]
  %s1 = inlined_call_operand.hbm [shape: f32[128,128], index: 1, kind: input, shape index: {}]
  %s2 = inlined_call_operand.hbm [shape: f32[128,128], index: 2, kind: input, shape index: {}]
  %s3 = inlined_call_operand.hbm [shape: f32[256,128], index: 3, kind: input, shape index: {}]
  %s4 = inlined_call_operand.vmem [shape: f32[1,128], index: 4, kind: input, shape index: {}]
  %s5 = inlined_call_operand.hbm [shape: f32[128,128], index: 5, kind: output, shape index: {}]
  %s6 = sld [smem:[#allocation0]]
  $region54: #{tpu_custom_call.1} parent=0
    _
  %s8 = ssub.s32 1, %s6
  %s9 = scalar_select 0, %s8, %s6
  $region1: #{tpu_custom_call.1} parent=0
    #allocation3 [shape = 'u8[65536]{0}', space=vmem, size = 0x10000, scoped, tag = 'input window, operand 0, single buffered']
    #allocation4 [shape = 's32[1]{0}', space=sflag, size = 0x4, scoped, tag = 'scoped memory for tpu_custom_call.1']
    #allocation5 [shape = 's32[1]{0}', space=sflag, size = 0x4, scoped, tag = 'scoped memory for tpu_custom_call.1']
    #allocation6 [shape = 'u8[65536]{0}', space=vmem, size = 0x10000, scoped, tag = 'input window, operand 1, single buffered']
    #allocation7 [shape = 's32[1]{0}', space=sflag, size = 0x4, scoped, tag = 'scoped memory for tpu_custom_call.1']
    #allocation8 [shape = 'u8[65536]{0}', space=vmem, size = 0x10000, scoped, tag = 'input window, operand 2, single buffered']
    #allocation9 [shape = 'u8[131072]{0}', space=vmem, size = 0x20000, scoped, tag = 'input window, operand 3, single buffered']
    #allocation10 [shape = 's32[1]{0}', space=sflag, size = 0x4, scoped, tag = 'scoped memory for tpu_custom_call.1']
    #allocation11 [shape = 'u8[65536]{0}', space=vmem, size = 0x10000, scoped, tag = 'output window, operand 0, single buffered']
    %10 = vsyncpa [#allocation4], 0
    %11 = vsyncpa [#allocation7], 0
    %12 = vsyncpa [#allocation10], 0
    %13 = vsyncpa [#allocation5], 0
    // Predicated region
    $region2: #{tpu_custom_call.1} parent=1 // pred_check
      _
    $region3: #{tpu_custom_call.1} parent=1 // pred_check_branch
      %15 = sbr.rel (0) target = $region5
    $region4: #{tpu_custom_call.1} parent=1 // pred_region
      %17 = vsyncadd [#allocation4], 0
      %s18 = sshll.u32 %s0, 4
      %s19 = int_to_ptr.hbm [resolvable:$true] %s18
      %s20 = sshll.u32 [#allocation3], 4
      %s21 = int_to_ptr.vmem [resolvable:$true] %s20
      %26 = dma.hbm_to_vmem [thread:$0]  %s19, 2048, %s21, [#allocation4], 128, 128, 8
    $region5: #{tpu_custom_call.1} parent=1 // pred_fallthru
      _
    // Predicated region
    $region6: #{tpu_custom_call.1} parent=1 // pred_check
      _
    $region7: #{tpu_custom_call.1} parent=1 // pred_check_branch
      %28 = sbr.rel (0) target = $region9
    $region8: #{tpu_custom_call.1} parent=1 // pred_region
      %30 = vsyncadd [#allocation7], 0
      %s31 = sshll.u32 %s1, 4
      %s32 = int_to_ptr.hbm [resolvable:$true] %s31
      %s33 = sshll.u32 [#allocation6], 4
      %s34 = int_to_ptr.vmem [resolvable:$true] %s33
      %39 = dma.hbm_to_vmem [thread:$0]  %s32, 2048, %s34, [#allocation7], 128, 128, 8
    $region9: #{tpu_custom_call.1} parent=1 // pred_fallthru
      _
    // Predicated region
    $region10: #{tpu_custom_call.1} parent=1 // pred_check
      _
    $region11: #{tpu_custom_call.1} parent=1 // pred_check_branch
      %41 = sbr.rel (0) target = $region13
    $region12: #{tpu_custom_call.1} parent=1 // pred_region
      %43 = vsyncadd [#allocation7], 0
      %s44 = sshll.u32 %s2, 4
      %s45 = int_to_ptr.hbm [resolvable:$true] %s44
      %s46 = sshll.u32 [#allocation8], 4
      %s47 = int_to_ptr.vmem [resolvable:$true] %s46
      %52 = dma.hbm_to_vmem [thread:$0]  %s45, 2048, %s47, [#allocation7], 128, 128, 8
    $region13: #{tpu_custom_call.1} parent=1 // pred_fallthru
      _
    // Predicated region
    $region14: #{tpu_custom_call.1} parent=1 // pred_check
      _
    $region15: #{tpu_custom_call.1} parent=1 // pred_check_branch
      %54 = sbr.rel (0) target = $region17
    $region16: #{tpu_custom_call.1} parent=1 // pred_region
      %56 = vsyncadd [#allocation10], 0
      %s57 = sshll.u32 %s3, 4
      %s58 = int_to_ptr.hbm [resolvable:$true] %s57
      %s59 = sshll.u32 [#allocation9], 4
      %s60 = int_to_ptr.vmem [resolvable:$true] %s59
      %65 = dma.hbm_to_vmem [thread:$0]  %s58, 4096, %s60, [#allocation10], 128, 128, 8
    $region17: #{tpu_custom_call.1} parent=1 // pred_fallthru
      _
    // Predicated region
    $region18: #{tpu_custom_call.1} parent=1 // pred_check
      _
    $region19: #{tpu_custom_call.1} parent=1 // pred_check_branch
      %67 = sbr.rel (0) target = $region21
    $region20: #{tpu_custom_call.1} parent=1 // pred_region
      _
    $region21: #{tpu_custom_call.1} parent=1 // pred_fallthru
      _
    // Predicated region
    $region22: #{tpu_custom_call.1} parent=1 // pred_check
      _
    $region23: #{tpu_custom_call.1} parent=1 // pred_check_branch
      %69 = sbr.rel (0) target = $region25
    $region24: #{tpu_custom_call.1} parent=1 // pred_region
      %71 = dma.done [#allocation4], 2048
    $region25: #{tpu_custom_call.1} parent=1 // pred_fallthru
      _
    // Predicated region
    $region26: #{tpu_custom_call.1} parent=1 // pred_check
      _
    $region27: #{tpu_custom_call.1} parent=1 // pred_check_branch
      %73 = sbr.rel (0) target = $region29
    $region28: #{tpu_custom_call.1} parent=1 // pred_region
      %75 = dma.done [#allocation7], 2048
    $region29: #{tpu_custom_call.1} parent=1 // pred_fallthru
      _
    // Predicated region
    $region30: #{tpu_custom_call.1} parent=1 // pred_check
      _
    $region31: #{tpu_custom_call.1} parent=1 // pred_check_branch
      %77 = sbr.rel (0) target = $region33
    $region32: #{tpu_custom_call.1} parent=1 // pred_region
      %79 = dma.done [#allocation7], 2048
    $region33: #{tpu_custom_call.1} parent=1 // pred_fallthru
      _
    // Predicated region
    $region34: #{tpu_custom_call.1} parent=1 // pred_check
      _
    $region35: #{tpu_custom_call.1} parent=1 // pred_check_branch
      %81 = sbr.rel (0) target = $region37
    $region36: #{tpu_custom_call.1} parent=1 // pred_region
      %83 = dma.done [#allocation10], 4096
    $region37: #{tpu_custom_call.1} parent=1 // pred_fallthru
      _
    %p84 = scmp.eq.s32.totalorder 0, 0
    // Predicated region
    $region38: #{tpu_custom_call.1} parent=1 // pred_check
      %p85 = pneg %p84
    $region39: #{tpu_custom_call.1} parent=1 // pred_check_branch
      %87 = sbr.rel (%p85) target = $region41
    $region40: #{tpu_custom_call.1} parent=1 // pred_region
      %88 = vst [vmem:[#allocation2] sm:$0xff] 0.0
      %89 = vst [vmem:[#allocation2 + $0x8] sm:$0xff] 0.0
      %90 = vst [vmem:[#allocation2 + $0x10] sm:$0xff] 0.0
      %91 = vst [vmem:[#allocation2 + $0x18] sm:$0xff] 0.0
      %92 = vst [vmem:[#allocation2 + $0x20] sm:$0xff] 0.0
      %93 = vst [vmem:[#allocation2 + $0x28] sm:$0xff] 0.0
      %94 = vst [vmem:[#allocation2 + $0x30] sm:$0xff] 0.0
      %95 = vst [vmem:[#allocation2 + $0x38] sm:$0xff] 0.0
      %96 = vst [vmem:[#allocation2 + $0x40] sm:$0xff] 0.0
      %97 = vst [vmem:[#allocation2 + $0x48] sm:$0xff] 0.0
      %98 = vst [vmem:[#allocation2 + $0x50] sm:$0xff] 0.0
      %99 = vst [vmem:[#allocation2 + $0x58] sm:$0xff] 0.0
      %100 = vst [vmem:[#allocation2 + $0x60] sm:$0xff] 0.0
      %101 = vst [vmem:[#allocation2 + $0x68] sm:$0xff] 0.0
      %102 = vst [vmem:[#allocation2 + $0x70] sm:$0xff] 0.0
      %103 = vst [vmem:[#allocation2 + $0x78] sm:$0xff] 0.0
    $region41: #{tpu_custom_call.1} parent=1 // pred_fallthru
      _
    %v104 = vld [vmem:[#allocation2] sm:$0xff]
    %v105 = vld [vmem:[#allocation2 + $0x8] sm:$0xff]
    %v106 = vld [vmem:[#allocation2 + $0x10] sm:$0xff]
    %v107 = vld [vmem:[#allocation2 + $0x18] sm:$0xff]
    %v108 = vld [vmem:[#allocation2 + $0x20] sm:$0xff]
    %v109 = vld [vmem:[#allocation2 + $0x28] sm:$0xff]
    %v110 = vld [vmem:[#allocation2 + $0x30] sm:$0xff]
    %v111 = vld [vmem:[#allocation2 + $0x38] sm:$0xff]
    %v112 = vld [vmem:[#allocation2 + $0x40] sm:$0xff]
    %v113 = vld [vmem:[#allocation2 + $0x48] sm:$0xff]
    %v114 = vld [vmem:[#allocation2 + $0x50] sm:$0xff]
    %v115 = vld [vmem:[#allocation2 + $0x58] sm:$0xff]
    %v116 = vld [vmem:[#allocation2 + $0x60] sm:$0xff]
    %v117 = vld [vmem:[#allocation2 + $0x68] sm:$0xff]
    %v118 = vld [vmem:[#allocation2 + $0x70] sm:$0xff]
    %v119 = vld [vmem:[#allocation2 + $0x78] sm:$0xff]
    %v120 = vld [vmem:[#allocation3] sm:$0xff]
    %v121 = vld [vmem:[#allocation3 + $0x8] sm:$0xff]
    %v122 = vld [vmem:[#allocation3 + $0x10] sm:$0xff]
    %v123 = vld [vmem:[#allocation3 + $0x18] sm:$0xff]
    %v124 = vld [vmem:[#allocation3 + $0x20] sm:$0xff]
    %v125 = vld [vmem:[#allocation3 + $0x28] sm:$0xff]
    %v126 = vld [vmem:[#allocation3 + $0x30] sm:$0xff]
    %v127 = vld [vmem:[#allocation3 + $0x38] sm:$0xff]
    %v128 = vld [vmem:[#allocation3 + $0x40] sm:$0xff]
    %v129 = vld [vmem:[#allocation3 + $0x48] sm:$0xff]
    %v130 = vld [vmem:[#allocation3 + $0x50] sm:$0xff]
    %v131 = vld [vmem:[#allocation3 + $0x58] sm:$0xff]
    %v132 = vld [vmem:[#allocation3 + $0x60] sm:$0xff]
    %v133 = vld [vmem:[#allocation3 + $0x68] sm:$0xff]
    %v134 = vld [vmem:[#allocation3 + $0x70] sm:$0xff]
    %v135 = vld [vmem:[#allocation3 + $0x78] sm:$0xff]
    %v136 = vld [vmem:[#allocation6] sm:$0xff]
    %v137 = vld [vmem:[#allocation6 + $0x8] sm:$0xff]
    %v138 = vld [vmem:[#allocation6 + $0x10] sm:$0xff]
    %v139 = vld [vmem:[#allocation6 + $0x18] sm:$0xff]
    %v140 = vld [vmem:[#allocation6 + $0x20] sm:$0xff]
    %v141 = vld [vmem:[#allocation6 + $0x28] sm:$0xff]
    %v142 = vld [vmem:[#allocation6 + $0x30] sm:$0xff]
    %v143 = vld [vmem:[#allocation6 + $0x38] sm:$0xff]
    %v144 = vld [vmem:[#allocation6 + $0x40] sm:$0xff]
    %v145 = vld [vmem:[#allocation6 + $0x48] sm:$0xff]
    %v146 = vld [vmem:[#allocation6 + $0x50] sm:$0xff]
    %v147 = vld [vmem:[#allocation6 + $0x58] sm:$0xff]
    %v148 = vld [vmem:[#allocation6 + $0x60] sm:$0xff]
    %v149 = vld [vmem:[#allocation6 + $0x68] sm:$0xff]
    %v150 = vld [vmem:[#allocation6 + $0x70] sm:$0xff]
    %v151 = vld [vmem:[#allocation6 + $0x78] sm:$0xff]
    %152 = vmatpush.msra.mxu0 %v151
    %153 = vmatpush.msra.mxu0 %v150
    %154 = vmatpush.msra.mxu0 %v149
    %155 = vmatpush.msra.mxu0 %v148
    %156 = vmatpush.msra.mxu0 %v147
    %157 = vmatpush.msra.mxu0 %v146
    %158 = vmatpush.msra.mxu0 %v145
    %159 = vmatpush.msra.mxu0 %v144
    %160 = vmatpush.msra.mxu0 %v143
    %161 = vmatpush.msra.mxu0 %v142
    %162 = vmatpush.msra.mxu0 %v141
    %163 = vmatpush.msra.mxu0 %v140
    %164 = vmatpush.msra.mxu0 %v139
    %165 = vmatpush.msra.mxu0 %v138
    %166 = vmatpush.msra.mxu0 %v137
    %167 = vmatpush.msra.mxu0 %v136
    %168 = vmatmul.f32.gmra.mxu0 %v120
    %v169 = vpop.f32.mrf.mxu0
    %v170 = vadd.f32 0.0, %v169
    %171 = vmatmul.f32.gmra.mxu0 %v121
    %v172 = vpop.f32.mrf.mxu0
    %v173 = vadd.f32 0.0, %v172
    %174 = vmatmul.f32.gmra.mxu0 %v122
    %v175 = vpop.f32.mrf.mxu0
    %v176 = vadd.f32 0.0, %v175
    %177 = vmatmul.f32.gmra.mxu0 %v123
    %v178 = vpop.f32.mrf.mxu0
    %v179 = vadd.f32 0.0, %v178
    %180 = vmatmul.f32.gmra.mxu0 %v124
    %v181 = vpop.f32.mrf.mxu0
    %v182 = vadd.f32 0.0, %v181
    %183 = vmatmul.f32.gmra.mxu0 %v125
    %v184 = vpop.f32.mrf.mxu0
    %v185 = vadd.f32 0.0, %v184
    %186 = vmatmul.f32.gmra.mxu0 %v126
    %v187 = vpop.f32.mrf.mxu0
    %v188 = vadd.f32 0.0, %v187
    %189 = vmatmul.f32.gmra.mxu0 %v127
    %v190 = vpop.f32.mrf.mxu0
    %v191 = vadd.f32 0.0, %v190
    %192 = vmatmul.f32.gmra.mxu0 %v128
    %v193 = vpop.f32.mrf.mxu0
    %v194 = vadd.f32 0.0, %v193
    %195 = vmatmul.f32.gmra.mxu0 %v129
    %v196 = vpop.f32.mrf.mxu0
    %v197 = vadd.f32 0.0, %v196
    %198 = vmatmul.f32.gmra.mxu0 %v130
    %v199 = vpop.f32.mrf.mxu0
    %v200 = vadd.f32 0.0, %v199
    %201 = vmatmul.f32.gmra.mxu0 %v131
    %v202 = vpop.f32.mrf.mxu0
    %v203 = vadd.f32 0.0, %v202
    %204 = vmatmul.f32.gmra.mxu0 %v132
    %v205 = vpop.f32.mrf.mxu0
    %v206 = vadd.f32 0.0, %v205
    %207 = vmatmul.f32.gmra.mxu0 %v133
    %v208 = vpop.f32.mrf.mxu0
    %v209 = vadd.f32 0.0, %v208
    %210 = vmatmul.f32.gmra.mxu0 %v134
    %v211 = vpop.f32.mrf.mxu0
    %v212 = vadd.f32 0.0, %v211
    %213 = vmatmul.f32.gmra.mxu0 %v135
    %v214 = vpop.f32.mrf.mxu0
    %v215 = vadd.f32 0.0, %v214
    %216 = vdwg.mxu0
    %v217 = vadd.f32 %v104, %v170
    %v218 = vadd.f32 %v105, %v173
    %v219 = vadd.f32 %v106, %v176
    %v220 = vadd.f32 %v107, %v179
    %v221 = vadd.f32 %v108, %v182
    %v222 = vadd.f32 %v109, %v185
    %v223 = vadd.f32 %v110, %v188
    %v224 = vadd.f32 %v111, %v191
    %v225 = vadd.f32 %v112, %v194
    %v226 = vadd.f32 %v113, %v197
    %v227 = vadd.f32 %v114, %v200
    %v228 = vadd.f32 %v115, %v203
    %v229 = vadd.f32 %v116, %v206
    %v230 = vadd.f32 %v117, %v209
    %v231 = vadd.f32 %v118, %v212
    %v232 = vadd.f32 %v119, %v215
    %233 = vst [vmem:[#allocation2] sm:$0xff] %v217
    %234 = vst [vmem:[#allocation2 + $0x8] sm:$0xff] %v218
    %235 = vst [vmem:[#allocation2 + $0x10] sm:$0xff] %v219
    %236 = vst [vmem:[#allocation2 + $0x18] sm:$0xff] %v220
    %237 = vst [vmem:[#allocation2 + $0x20] sm:$0xff] %v221
    %238 = vst [vmem:[#allocation2 + $0x28] sm:$0xff] %v222
    %239 = vst [vmem:[#allocation2 + $0x30] sm:$0xff] %v223
    %240 = vst [vmem:[#allocation2 + $0x38] sm:$0xff] %v224
    %241 = vst [vmem:[#allocation2 + $0x40] sm:$0xff] %v225
    %242 = vst [vmem:[#allocation2 + $0x48] sm:$0xff] %v226
    %243 = vst [vmem:[#allocation2 + $0x50] sm:$0xff] %v227
    %244 = vst [vmem:[#allocation2 + $0x58] sm:$0xff] %v228
    %245 = vst [vmem:[#allocation2 + $0x60] sm:$0xff] %v229
    %246 = vst [vmem:[#allocation2 + $0x68] sm:$0xff] %v230
    %247 = vst [vmem:[#allocation2 + $0x70] sm:$0xff] %v231
    %248 = vst [vmem:[#allocation2 + $0x78] sm:$0xff] %v232
    // Predicated region
    $region42: #{tpu_custom_call.1} parent=1 // pred_check
      %p249 = pneg %p84
    $region43: #{tpu_custom_call.1} parent=1 // pred_check_branch
      %251 = sbr.rel (%p249) target = $region45
    $region44: #{tpu_custom_call.1} parent=1 // pred_region
      %v252 = vld [vmem:[#allocation2] sm:$0xff]
      %v253 = vld [vmem:[#allocation2 + $0x8] sm:$0xff]
      %v254 = vld [vmem:[#allocation2 + $0x10] sm:$0xff]
      %v255 = vld [vmem:[#allocation2 + $0x18] sm:$0xff]
      %v256 = vld [vmem:[#allocation2 + $0x20] sm:$0xff]
      %v257 = vld [vmem:[#allocation2 + $0x28] sm:$0xff]
      %v258 = vld [vmem:[#allocation2 + $0x30] sm:$0xff]
      %v259 = vld [vmem:[#allocation2 + $0x38] sm:$0xff]
      %v260 = vld [vmem:[#allocation2 + $0x40] sm:$0xff]
      %v261 = vld [vmem:[#allocation2 + $0x48] sm:$0xff]
      %v262 = vld [vmem:[#allocation2 + $0x50] sm:$0xff]
      %v263 = vld [vmem:[#allocation2 + $0x58] sm:$0xff]
      %v264 = vld [vmem:[#allocation2 + $0x60] sm:$0xff]
      %v265 = vld [vmem:[#allocation2 + $0x68] sm:$0xff]
      %v266 = vld [vmem:[#allocation2 + $0x70] sm:$0xff]
      %v267 = vld [vmem:[#allocation2 + $0x78] sm:$0xff]
      %v268 = vld [vmem:[#allocation8] sm:$0xff]
      %v269 = vld [vmem:[#allocation8 + $0x8] sm:$0xff]
      %v270 = vld [vmem:[#allocation8 + $0x10] sm:$0xff]
      %v271 = vld [vmem:[#allocation8 + $0x18] sm:$0xff]
      %v272 = vld [vmem:[#allocation8 + $0x20] sm:$0xff]
      %v273 = vld [vmem:[#allocation8 + $0x28] sm:$0xff]
      %v274 = vld [vmem:[#allocation8 + $0x30] sm:$0xff]
      %v275 = vld [vmem:[#allocation8 + $0x38] sm:$0xff]
      %v276 = vld [vmem:[#allocation8 + $0x40] sm:$0xff]
      %v277 = vld [vmem:[#allocation8 + $0x48] sm:$0xff]
      %v278 = vld [vmem:[#allocation8 + $0x50] sm:$0xff]
      %v279 = vld [vmem:[#allocation8 + $0x58] sm:$0xff]
      %v280 = vld [vmem:[#allocation8 + $0x60] sm:$0xff]
      %v281 = vld [vmem:[#allocation8 + $0x68] sm:$0xff]
      %v282 = vld [vmem:[#allocation8 + $0x70] sm:$0xff]
      %v283 = vld [vmem:[#allocation8 + $0x78] sm:$0xff]
      %v284 = vld [vmem:[#allocation9] sm:$0xff]
      %v285 = vld [vmem:[#allocation9 + $0x8] sm:$0xff]
      %v286 = vld [vmem:[#allocation9 + $0x10] sm:$0xff]
      %v287 = vld [vmem:[#allocation9 + $0x18] sm:$0xff]
      %v288 = vld [vmem:[#allocation9 + $0x20] sm:$0xff]
      %v289 = vld [vmem:[#allocation9 + $0x28] sm:$0xff]
      %v290 = vld [vmem:[#allocation9 + $0x30] sm:$0xff]
      %v291 = vld [vmem:[#allocation9 + $0x38] sm:$0xff]
      %v292 = vld [vmem:[#allocation9 + $0x40] sm:$0xff]
      %v293 = vld [vmem:[#allocation9 + $0x48] sm:$0xff]
      %v294 = vld [vmem:[#allocation9 + $0x50] sm:$0xff]
      %v295 = vld [vmem:[#allocation9 + $0x58] sm:$0xff]
      %v296 = vld [vmem:[#allocation9 + $0x60] sm:$0xff]
      %v297 = vld [vmem:[#allocation9 + $0x68] sm:$0xff]
      %v298 = vld [vmem:[#allocation9 + $0x70] sm:$0xff]
      %v299 = vld [vmem:[#allocation9 + $0x78] sm:$0xff]
      %v300 = vld [vmem:[#allocation9 + $0x80] sm:$0xff]
      %v301 = vld [vmem:[#allocation9 + $0x88] sm:$0xff]
      %v302 = vld [vmem:[#allocation9 + $0x90] sm:$0xff]
      %v303 = vld [vmem:[#allocation9 + $0x98] sm:$0xff]
      %v304 = vld [vmem:[#allocation9 + $0xa0] sm:$0xff]
      %v305 = vld [vmem:[#allocation9 + $0xa8] sm:$0xff]
      %v306 = vld [vmem:[#allocation9 + $0xb0] sm:$0xff]
      %v307 = vld [vmem:[#allocation9 + $0xb8] sm:$0xff]
      %v308 = vld [vmem:[#allocation9 + $0xc0] sm:$0xff]
      %v309 = vld [vmem:[#allocation9 + $0xc8] sm:$0xff]
      %v310 = vld [vmem:[#allocation9 + $0xd0] sm:$0xff]
      %v311 = vld [vmem:[#allocation9 + $0xd8] sm:$0xff]
      %v312 = vld [vmem:[#allocation9 + $0xe0] sm:$0xff]
      %v313 = vld [vmem:[#allocation9 + $0xe8] sm:$0xff]
      %v314 = vld [vmem:[#allocation9 + $0xf0] sm:$0xff]
      %v315 = vld [vmem:[#allocation9 + $0xf8] sm:$0xff]
      %v316 = vld [vmem:[%s4] sm:$0x1]
      %v318 = vperm.slane %v316, 0
      %320 = vmatpush.msra.mxu0 %v299
      %321 = vmatpush.msra.mxu0 %v298
      %322 = vmatpush.msra.mxu0 %v297
      %323 = vmatpush.msra.mxu0 %v296
      %324 = vmatpush.msra.mxu0 %v295
      %325 = vmatpush.msra.mxu0 %v294
      %326 = vmatpush.msra.mxu0 %v293
      %327 = vmatpush.msra.mxu0 %v292
      %328 = vmatpush.msra.mxu0 %v291
      %329 = vmatpush.msra.mxu0 %v290
      %330 = vmatpush.msra.mxu0 %v289
      %331 = vmatpush.msra.mxu0 %v288
      %332 = vmatpush.msra.mxu0 %v287
      %333 = vmatpush.msra.mxu0 %v286
      %334 = vmatpush.msra.mxu0 %v285
      %335 = vmatpush.msra.mxu0 %v284
      %336 = vmatmul.f32.gmra.mxu0 %v252
      %v337 = vpop.f32.mrf.mxu0
      %v338 = vadd.f32 %v318, %v337
      %339 = vmatmul.f32.gmra.mxu0 %v253
      %v340 = vpop.f32.mrf.mxu0
      %v341 = vadd.f32 %v318, %v340
      %342 = vmatmul.f32.gmra.mxu0 %v254
      %v343 = vpop.f32.mrf.mxu0
      %v344 = vadd.f32 %v318, %v343
      %345 = vmatmul.f32.gmra.mxu0 %v255
      %v346 = vpop.f32.mrf.mxu0
      %v347 = vadd.f32 %v318, %v346
      %348 = vmatmul.f32.gmra.mxu0 %v256
      %v349 = vpop.f32.mrf.mxu0
      %v350 = vadd.f32 %v318, %v349
      %351 = vmatmul.f32.gmra.mxu0 %v257
      %v352 = vpop.f32.mrf.mxu0
      %v353 = vadd.f32 %v318, %v352
      %354 = vmatmul.f32.gmra.mxu0 %v258
      %v355 = vpop.f32.mrf.mxu0
      %v356 = vadd.f32 %v318, %v355
      %357 = vmatmul.f32.gmra.mxu0 %v259
      %v358 = vpop.f32.mrf.mxu0
      %v359 = vadd.f32 %v318, %v358
      %360 = vmatmul.f32.gmra.mxu0 %v260
      %v361 = vpop.f32.mrf.mxu0
      %v362 = vadd.f32 %v318, %v361
      %363 = vmatmul.f32.gmra.mxu0 %v261
      %v364 = vpop.f32.mrf.mxu0
      %v365 = vadd.f32 %v318, %v364
      %366 = vmatmul.f32.gmra.mxu0 %v262
      %v367 = vpop.f32.mrf.mxu0
      %v368 = vadd.f32 %v318, %v367
      %369 = vmatmul.f32.gmra.mxu0 %v263
      %v370 = vpop.f32.mrf.mxu0
      %v371 = vadd.f32 %v318, %v370
      %372 = vmatmul.f32.gmra.mxu0 %v264
      %v373 = vpop.f32.mrf.mxu0
      %v374 = vadd.f32 %v318, %v373
      %375 = vmatmul.f32.gmra.mxu0 %v265
      %v376 = vpop.f32.mrf.mxu0
      %v377 = vadd.f32 %v318, %v376
      %378 = vmatmul.f32.gmra.mxu0 %v266
      %v379 = vpop.f32.mrf.mxu0
      %v380 = vadd.f32 %v318, %v379
      %381 = vmatmul.f32.gmra.mxu0 %v267
      %v382 = vpop.f32.mrf.mxu0
      %v383 = vadd.f32 %v318, %v382
      %384 = vdwg.mxu0
      %385 = vmatpush.msra.mxu0 %v315
      %386 = vmatpush.msra.mxu0 %v314
      %387 = vmatpush.msra.mxu0 %v313
      %388 = vmatpush.msra.mxu0 %v312
      %389 = vmatpush.msra.mxu0 %v311
      %390 = vmatpush.msra.mxu0 %v310
      %391 = vmatpush.msra.mxu0 %v309
      %392 = vmatpush.msra.mxu0 %v308
      %393 = vmatpush.msra.mxu0 %v307
      %394 = vmatpush.msra.mxu0 %v306
      %395 = vmatpush.msra.mxu0 %v305
      %396 = vmatpush.msra.mxu0 %v304
      %397 = vmatpush.msra.mxu0 %v303
      %398 = vmatpush.msra.mxu0 %v302
      %399 = vmatpush.msra.mxu0 %v301
      %400 = vmatpush.msra.mxu0 %v300
      %401 = vmatmul.f32.gmra.mxu0 %v268
      %v402 = vpop.f32.mrf.mxu0
      %v403 = vadd.f32 %v338, %v402
      %404 = vmatmul.f32.gmra.mxu0 %v269
      %v405 = vpop.f32.mrf.mxu0
      %v406 = vadd.f32 %v341, %v405
      %407 = vmatmul.f32.gmra.mxu0 %v270
      %v408 = vpop.f32.mrf.mxu0
      %v409 = vadd.f32 %v344, %v408
      %410 = vmatmul.f32.gmra.mxu0 %v271
      %v411 = vpop.f32.mrf.mxu0
      %v412 = vadd.f32 %v347, %v411
      %413 = vmatmul.f32.gmra.mxu0 %v272
      %v414 = vpop.f32.mrf.mxu0
      %v415 = vadd.f32 %v350, %v414
      %416 = vmatmul.f32.gmra.mxu0 %v273
      %v417 = vpop.f32.mrf.mxu0
      %v418 = vadd.f32 %v353, %v417
      %419 = vmatmul.f32.gmra.mxu0 %v274
      %v420 = vpop.f32.mrf.mxu0
      %v421 = vadd.f32 %v356, %v420
      %422 = vmatmul.f32.gmra.mxu0 %v275
      %v423 = vpop.f32.mrf.mxu0
      %v424 = vadd.f32 %v359, %v423
      %425 = vmatmul.f32.gmra.mxu0 %v276
      %v426 = vpop.f32.mrf.mxu0
      %v427 = vadd.f32 %v362, %v426
      %428 = vmatmul.f32.gmra.mxu0 %v277
      %v429 = vpop.f32.mrf.mxu0
      %v430 = vadd.f32 %v365, %v429
      %431 = vmatmul.f32.gmra.mxu0 %v278
      %v432 = vpop.f32.mrf.mxu0
      %v433 = vadd.f32 %v368, %v432
      %434 = vmatmul.f32.gmra.mxu0 %v279
      %v435 = vpop.f32.mrf.mxu0
      %v436 = vadd.f32 %v371, %v435
      %437 = vmatmul.f32.gmra.mxu0 %v280
      %v438 = vpop.f32.mrf.mxu0
      %v439 = vadd.f32 %v374, %v438
      %440 = vmatmul.f32.gmra.mxu0 %v281
      %v441 = vpop.f32.mrf.mxu0
      %v442 = vadd.f32 %v377, %v441
      %443 = vmatmul.f32.gmra.mxu0 %v282
      %v444 = vpop.f32.mrf.mxu0
      %v445 = vadd.f32 %v380, %v444
      %446 = vmatmul.f32.gmra.mxu0 %v283
      %v447 = vpop.f32.mrf.mxu0
      %v448 = vadd.f32 %v383, %v447
      %449 = vdwg.mxu0
      %v450 = vmax.f32 %v403, 0.0
      %v451 = vmax.f32 %v406, 0.0
      %v452 = vmax.f32 %v409, 0.0
      %v453 = vmax.f32 %v412, 0.0
      %v454 = vmax.f32 %v415, 0.0
      %v455 = vmax.f32 %v418, 0.0
      %v456 = vmax.f32 %v421, 0.0
      %v457 = vmax.f32 %v424, 0.0
      %v458 = vmax.f32 %v427, 0.0
      %v459 = vmax.f32 %v430, 0.0
      %v460 = vmax.f32 %v433, 0.0
      %v461 = vmax.f32 %v436, 0.0
      %v462 = vmax.f32 %v439, 0.0
      %v463 = vmax.f32 %v442, 0.0
      %v464 = vmax.f32 %v445, 0.0
      %v465 = vmax.f32 %v448, 0.0
      %466 = vst [vmem:[#allocation11] sm:$0xff] %v450
      %467 = vst [vmem:[#allocation11 + $0x8] sm:$0xff] %v451
      %468 = vst [vmem:[#allocation11 + $0x10] sm:$0xff] %v452
      %469 = vst [vmem:[#allocation11 + $0x18] sm:$0xff] %v453
      %470 = vst [vmem:[#allocation11 + $0x20] sm:$0xff] %v454
      %471 = vst [vmem:[#allocation11 + $0x28] sm:$0xff] %v455
      %472 = vst [vmem:[#allocation11 + $0x30] sm:$0xff] %v456
      %473 = vst [vmem:[#allocation11 + $0x38] sm:$0xff] %v457
      %474 = vst [vmem:[#allocation11 + $0x40] sm:$0xff] %v458
      %475 = vst [vmem:[#allocation11 + $0x48] sm:$0xff] %v459
      %476 = vst [vmem:[#allocation11 + $0x50] sm:$0xff] %v460
      %477 = vst [vmem:[#allocation11 + $0x58] sm:$0xff] %v461
      %478 = vst [vmem:[#allocation11 + $0x60] sm:$0xff] %v462
      %479 = vst [vmem:[#allocation11 + $0x68] sm:$0xff] %v463
      %480 = vst [vmem:[#allocation11 + $0x70] sm:$0xff] %v464
      %481 = vst [vmem:[#allocation11 + $0x78] sm:$0xff] %v465
    $region45: #{tpu_custom_call.1} parent=1 // pred_fallthru
      _
    // Predicated region
    $region46: #{tpu_custom_call.1} parent=1 // pred_check
      _
    $region47: #{tpu_custom_call.1} parent=1 // pred_check_branch
      %483 = sbr.rel (0) target = $region49
    $region48: #{tpu_custom_call.1} parent=1 // pred_region
      %485 = vsyncadd [#allocation5], 0
      %s486 = sshll.u32 [#allocation11], 4
      %s487 = int_to_ptr.vmem [resolvable:$true] %s486
      %s488 = sshll.u32 %s5, 4
      %s489 = int_to_ptr.hbm [resolvable:$true] %s488
      %494 = dma.vmem_to_hbm [thread:$0]  %s487, 2048, %s489, [#allocation5], 128, 128, 8
    $region49: #{tpu_custom_call.1} parent=1 // pred_fallthru
      _
    // Predicated region
    $region50: #{tpu_custom_call.1} parent=1 // pred_check
      _
    $region51: #{tpu_custom_call.1} parent=1 // pred_check_branch
      %496 = sbr.rel (0) target = $region53
    $region52: #{tpu_custom_call.1} parent=1 // pred_region
      %498 = dma.done [#allocation5], 2048
    $region53: #{tpu_custom_call.1} parent=1 // pred_fallthru
      _
    %499 = vsyncpa [#allocation4], 1
    %500 = vsyncpa [#allocation7], 1
    %501 = vsyncpa [#allocation10], 1
    %502 = vsyncpa [#allocation5], 1

</llo_original>
